<compile_context>
chip_gen: v7x
topology: tpu7x:2x2x1
jax: 0.10.0
libtpu: 0.0.40
codegen_flags: <defaults>
</compile_context>

<pallas_src>
import functools

import jax
import jax.numpy as jnp
from jax import lax
from jax.experimental import pallas as pl
from jax.experimental.pallas import tpu as pltpu

_INV_SQRT2 = 0.7071067811865476


def _layer_norm_f32(x, gamma, beta, eps):
    xf = x.astype(jnp.float32)
    mean = jnp.mean(xf, axis=-1, keepdims=True)
    centered = xf - mean
    var = jnp.mean(centered * centered, axis=-1, keepdims=True)
    xn = centered * lax.rsqrt(var + eps)
    return xn * gamma.astype(jnp.float32) + beta.astype(jnp.float32)


def _gelu_exact_f32(h):
    # Exact erf-form GELU (torch.nn.GELU default).
    return 0.5 * h * (1.0 + lax.erf(h * _INV_SQRT2))


# ----------------------------- kernels ------------------------------------------------------- #

def _ffn_kernel_resident(x_ref, g_ref, b_ref, w1_ref, b1_ref, w2_ref, b2_ref, o_ref, *, eps):
    """1-D grid over row tiles; whole W1/W2 resident in VMEM; writes o_ref directly."""
    xn = _layer_norm_f32(x_ref[...], g_ref[...], b_ref[...], eps).astype(w1_ref.dtype)
    h = jnp.dot(xn, w1_ref[...], preferred_element_type=jnp.float32)
    h = _gelu_exact_f32(h + b1_ref[...].astype(jnp.float32))
    # Dropout(p=0.0) / eval -> identity.
    out = jnp.dot(h.astype(w2_ref.dtype), w2_ref[...], preferred_element_type=jnp.float32)
    o_ref[...] = (out + b2_ref[...].astype(jnp.float32)).astype(o_ref.dtype)


def _ffn_kernel_streaming(x_ref, g_ref, b_ref, w1_ref, b1_ref, w2_ref, b2_ref, o_ref,
                          xn_ref, acc_ref, *, eps):
    """2-D grid (row tile parallel, hidden tile arbitrary); weights stream through VMEM."""
    h_idx = pl.program_id(1)
    n_h = pl.num_programs(1)

    @pl.when(h_idx == 0)
    def _():
        # LayerNorm once per row tile (f32 math); cached in the matmul-operand dtype.
        xn_ref[...] = _layer_norm_f32(x_ref[...], g_ref[...], b_ref[...], eps).astype(xn_ref.dtype)

    xn = xn_ref[...].astype(w1_ref.dtype)
    h = jnp.dot(xn, w1_ref[...], preferred_element_type=jnp.float32)
    h = _gelu_exact_f32(h + b1_ref[...].astype(jnp.float32))
    # Dropout(p=0.0) / eval -> identity.
    partial = jnp.dot(h.astype(w2_ref.dtype), w2_ref[...], preferred_element_type=jnp.float32)

    # First step initializes the accumulator with the dot result (no zero-fill + add); middle
    # steps accumulate; the last step fuses acc + partial + bias + downcast into the output block
    # (skips one full (tm, D) f32 accumulator round trip).  Wrapper guarantees n_h >= 2 here.
    @pl.when(h_idx == 0)
    def _():
        acc_ref[...] = partial

    @pl.when(jnp.logical_and(h_idx > 0, h_idx < n_h - 1))
    def _():
        acc_ref[...] += partial

    @pl.when(h_idx == n_h - 1)
    def _():
        o_ref[...] = (acc_ref[...] + partial
                      + b2_ref[...].astype(jnp.float32)).astype(o_ref.dtype)


# ----------------------------- wrapper -------------------------------------------------------- #

def _tpu_generation():
    try:
        kind = jax.devices()[0].device_kind.lower()
    except Exception:
        return "unknown"
    if "v7" in kind or "tpu7" in kind:
        return "v7x"
    if "v6" in kind:
        return "v6e"
    if "v5" in kind:
        return "v5e"
    return "unknown"


def _round_up(a, b):
    return -(-a // b) * b


def _as_row(p):
    p = jnp.asarray(p)
    return p.reshape(1, -1) if p.ndim == 1 else p


def _vmem_bytes(tm, th, D, x_bytes, w_bytes, resident):
    """Conservative VMEM estimate for one grid step (double-buffered inputs/outputs)."""
    act = 4 * tm * D * x_bytes                   # x + out tiles, double-buffered
    weights = 4 * D * th * w_bytes               # W1 + W2 slices, double-buffered
    inter = 2 * tm * th * 4                      # f32 hidden intermediate + GELU temporaries
    scratch = 0 if resident else tm * D * (w_bytes + 4)   # xn cache + f32 accumulator
    small = 8 * (D + th) * 4                     # gamma/beta/b1/b2 blocks
    return act + weights + inter + scratch + small


def feedforward_pallas(x, gamma, beta, w1, b1, w2, b2, *, eps=1e-5,
                       tm=None, th=None, vmem_limit_bytes=None):
    """x: (B, S, D); weights are (in_features, out_features). Returns (B, S, D)."""
    assert eps > 0.0, "eps must be > 0 (zero-padded rows rely on it for a finite rsqrt)"
    B, S, D = x.shape
    H = w1.shape[1]
    M = B * S
    x2 = x.reshape(M, D)
    gamma, beta, b1, b2 = map(_as_row, (gamma, beta, b1, b2))   # accept 1-D torch-style params

    gen = _tpu_generation()
    x_bytes = jnp.dtype(x.dtype).itemsize
    w_bytes = jnp.dtype(w1.dtype).itemsize

    if vmem_limit_bytes is None:
        # v7x has only 64 MiB VMEM/TC -> conservative budget; v5e/v6e have 128 MiB -> raise the
        # scoped limit well above the default so bigger tiles compile.
        vmem_limit_bytes = {"v7x": 48 << 20, "v6e": 110 << 20, "v5e": 100 << 20}.get(gen, 48 << 20)
    budget = int(vmem_limit_bytes * 0.9)

    # --- row tile: sublane-aligned, "parallel" (megacore-shardable) axis, sized to keep weight
    #     re-streaming above the per-generation HBM/MXU crossover. ---
    sub = 16 if x.dtype == jnp.bfloat16 else 8
    if tm is None:
        if gen == "v7x":
            tm = 512
        elif gen == "v6e":
            tm = 1024 if x.dtype == jnp.bfloat16 else 512
        elif gen == "v5e":
            tm = 512
        else:
            tm = 256
    tm = max(sub, (tm // sub) * sub)
    tm = min(tm, _round_up(M, sub))              # don't over-pad tiny problems
    # v7x has 2 TensorCores per chip: make sure the parallel row axis has >= 2 tiles.
    if gen == "v7x" and M > sub and _round_up(M, tm) // tm < 2:
        tm = max(sub, _round_up(-(-M // 2), sub))

    # --- hidden tiling: fully-resident fast path when the whole W1/W2 fit the VMEM budget,
    #     otherwise a budget-driven, lane-dense hidden tile on an "arbitrary" grid axis. ---
    resident = False
    if th is None:
        if _vmem_bytes(tm, H, D, x_bytes, w_bytes, resident=True) <= budget:
            resident = True
            th = H
        else:
            H_lane = _round_up(H, 128)
            while True:
                fixed = _vmem_bytes(tm, 0, D, x_bytes, w_bytes, resident=False)
                per_th = 4 * D * w_bytes + 2 * tm * 4 + 8 * 4
                th_max = (budget - fixed) // per_th
                if th_max >= 128 or tm <= sub:
                    break
                tm = max(sub, ((tm // 2) // sub) * sub)   # last resort: shrink the row tile
            th_max = int(max(128, min(th_max, H_lane)))
            th_max = (th_max // 128) * 128
            th = 128
            # prefer an exact divisor of the lane-padded H to avoid wasted (padded) hidden columns
            for cand in range(th_max, 127, -128):
                if H_lane % cand == 0:
                    th = cand
                    break
            if th >= H:                           # tiny H: resident after all
                resident = True
                th = H
    else:
        if th >= H:
            resident = True
            th = H
        else:
            th = max(128, (th // 128) * 128)      # lane-dense user tile

    M_pad = _round_up(M, tm)
    if M_pad != M:
        x2 = jnp.pad(x2, ((0, M_pad - M), (0, 0)))

    if resident:
        out2 = pl.pallas_call(
            functools.partial(_ffn_kernel_resident, eps=eps),
            out_shape=jax.ShapeDtypeStruct((M_pad, D), x.dtype),
            grid_spec=pltpu.PrefetchScalarGridSpec(
                num_scalar_prefetch=0,
                grid=(M_pad // tm,),
                in_specs=[
                    pl.BlockSpec((tm, D), lambda i: (i, 0)),   # x row tile
                    pl.BlockSpec((1, D), lambda i: (0, 0)),    # LN gamma
                    pl.BlockSpec((1, D), lambda i: (0, 0)),    # LN beta
                    pl.BlockSpec((D, H), lambda i: (0, 0)),    # W1 (resident, DMA'd once)
                    pl.BlockSpec((1, H), lambda i: (0, 0)),    # b1
                    pl.BlockSpec((H, D), lambda i: (0, 0)),    # W2 (resident, DMA'd once)
                    pl.BlockSpec((1, D), lambda i: (0, 0)),    # b2
                ],
                out_specs=pl.BlockSpec((tm, D), lambda i: (i, 0)),
            ),
            compiler_params=pltpu.CompilerParams(
                dimension_semantics=("parallel",),
                vmem_limit_bytes=vmem_limit_bytes,
            ),
        )(x2, gamma, beta, w1, b1, w2, b2)
    else:
        H_pad = _round_up(H, th)
        if H_pad != H:
            # Zero-padding keeps semantics exact: padded h columns are GELU(0)=0 and multiply
            # zero-padded W2 rows, contributing nothing to the output.
            w1 = jnp.pad(w1, ((0, 0), (0, H_pad - H)))
            b1 = jnp.pad(b1, ((0, 0), (0, H_pad - H)))
            w2 = jnp.pad(w2, ((0, H_pad - H), (0, 0)))
        n_h = H_pad // th
        assert n_h >= 2, "streaming path requires at least two hidden tiles"
        out2 = pl.pallas_call(
            functools.partial(_ffn_kernel_streaming, eps=eps),
            out_shape=jax.ShapeDtypeStruct((M_pad, D), x.dtype),
            grid_spec=pltpu.PrefetchScalarGridSpec(
                num_scalar_prefetch=0,
                grid=(M_pad // tm, n_h),
                in_specs=[
                    pl.BlockSpec((tm, D), lambda i, h: (i, 0)),   # x row tile
                    pl.BlockSpec((1, D), lambda i, h: (0, 0)),    # LN gamma
                    pl.BlockSpec((1, D), lambda i, h: (0, 0)),    # LN beta
                    pl.BlockSpec((D, th), lambda i, h: (0, h)),   # W1 hidden slice
                    pl.BlockSpec((1, th), lambda i, h: (0, h)),   # b1 hidden slice
                    pl.BlockSpec((th, D), lambda i, h: (h, 0)),   # W2 hidden slice
                    pl.BlockSpec((1, D), lambda i, h: (0, 0)),    # b2
                ],
                out_specs=pl.BlockSpec((tm, D), lambda i, h: (i, 0)),
                scratch_shapes=[
                    pltpu.VMEM((tm, D), w1.dtype),     # cached LayerNorm output (operand dtype)
                    pltpu.VMEM((tm, D), jnp.float32),  # f32 accumulator for the second matmul
                ],
            ),
            compiler_params=pltpu.CompilerParams(
                dimension_semantics=("parallel", "arbitrary"),
                vmem_limit_bytes=vmem_limit_bytes,
            ),
        )(x2, gamma, beta, w1, b1, w2, b2)

    if M_pad != M:
        out2 = out2[:M]
    return out2.reshape(B, S, D)


# ----------------------------- reference & tests ---------------------------------------------- #

def feedforward_ref(x, gamma, beta, w1, b1, w2, b2, eps=1e-5, precision=None):
    xf = x.astype(jnp.float32)
    mean = jnp.mean(xf, axis=-1, keepdims=True)
    var = jnp.mean((xf - mean) ** 2, axis=-1, keepdims=True)
    xn = (xf - mean) * lax.rsqrt(var + eps) * jnp.asarray(gamma, jnp.float32) \
         + jnp.asarray(beta, jnp.float32)
    h = jnp.dot(xn, w1.astype(jnp.float32), precision=precision) + jnp.asarray(b1, jnp.float32)
    h = 0.5 * h * (1.0 + lax.erf(h * _INV_SQRT2))
    out = jnp.dot(h, w2.astype(jnp.float32), precision=precision) + jnp.asarray(b2, jnp.float32)
    return out


def _make_params(key, D, H, dtype=jnp.float32):
    kw1, kb1, kw2, kb2, kg, kb = jax.random.split(key, 6)
    gamma = (1.0 + 0.1 * jax.random.normal(kg, (1, D), jnp.float32)).astype(dtype)
    beta = (0.1 * jax.random.normal(kb, (1, D), jnp.float32)).astype(dtype)
    lim1 = 1.0 / float(D) ** 0.5
    w1 = jax.random.uniform(kw1, (D, H), jnp.float32, -lim1, lim1).astype(dtype)
    b1 = jax.random.uniform(kb1, (1, H), jnp.float32, -lim1, lim1).astype(dtype)
    lim2 = 1.0 / float(H) ** 0.5
    w2 = jax.random.uniform(kw2, (H, D), jnp.float32, -lim2, lim2).astype(dtype)
    b2 = jax.random.uniform(kb2, (1, D), jnp.float32, -lim2, lim2).astype(dtype)
    return gamma, beta, w1, b1, w2, b2


if __name__ == "__main__":
    key = jax.random.PRNGKey(0)
    k_small, k_med, k_bf16, k_pad = jax.random.split(key, 4)

    # --- small f32 sanity test (module-implied shapes): resident fast path ---
    B, S, D, H = 2, 8, 32, 64
    kx, kp = jax.random.split(k_small)
    x = jax.random.normal(kx, (B, S, D), dtype=jnp.float32)
    gamma, beta, w1, b1, w2, b2 = _make_params(kp, D, H, jnp.float32)
    out = feedforward_pallas(x, gamma, beta, w1, b1, w2, b2)
    out = jax.block_until_ready(out)
    ref = feedforward_ref(x, gamma, beta, w1, b1, w2, b2)
    assert out.shape == (B, S, D)
    assert jnp.allclose(out, ref, atol=1e-5, rtol=1e-5)

    # --- medium f32: explicit tiles -> streaming path (M padding + H-tile accumulation) ---
    B2, S2, D2, H2 = 2, 60, 128, 512    # M = 120 -> padded with tm=64
    kx2, kp2 = jax.random.split(k_med)
    x2 = jax.random.normal(kx2, (B2, S2, D2), dtype=jnp.float32)
    p2 = _make_params(kp2, D2, H2, jnp.float32)
    ref2 = feedforward_ref(x2, *p2, precision=lax.Precision.HIGHEST)
    out2 = jax.block_until_ready(feedforward_pallas(x2, *p2, tm=64, th=128))
    assert out2.shape == (B2, S2, D2)
    assert jnp.allclose(out2, ref2, atol=2e-3, rtol=2e-3)
    # same inputs through the automatic (budget-driven) tile selection
    out2b = jax.block_until_ready(feedforward_pallas(x2, *p2))
    assert jnp.allclose(out2b, ref2, atol=2e-3, rtol=2e-3)

    # --- bf16 weights/activations path (f32 LN + f32 accumulation inside the kernel) ---
    kx3, kp3 = jax.random.split(k_bf16)
    x3 = jax.random.normal(kx3, (B2, S2, D2), dtype=jnp.float32).astype(jnp.bfloat16)
    p3 = _make_params(kp3, D2, H2, jnp.bfloat16)
    out3 = jax.block_until_ready(feedforward_pallas(x3, *p3, tm=64, th=128))
    ref3 = feedforward_ref(x3, *p3, precision=lax.Precision.HIGHEST)
    assert out3.shape == (B2, S2, D2)
    assert jnp.allclose(out3.astype(jnp.float32), ref3, atol=5e-2, rtol=5e-2)

    # --- H not divisible by th: exercises hidden zero-padding, 2-step accumulate, 1-D params ---
    B4, S4, D4, H4 = 2, 40, 128, 384
    kx4, kp4 = jax.random.split(k_pad)
    x4 = jax.random.normal(kx4, (B4, S4, D4), dtype=jnp.float32)
    g4, be4, w14, b14, w24, b24 = _make_params(kp4, D4, H4, jnp.float32)
    out4 = feedforward_pallas(x4, g4.reshape(-1), be4.reshape(-1), w14, b14.reshape(-1),
                              w24, b24.reshape(-1), tm=64, th=256)   # H padded 384 -> 512
    out4 = jax.block_until_ready(out4)
    ref4 = feedforward_ref(x4, g4, be4, w14, b14, w24, b24, precision=lax.Precision.HIGHEST)
    assert out4.shape == (B4, S4, D4)
    assert jnp.allclose(out4, ref4, atol=2e-3, rtol=2e-3)

    print("KERNEL_OK")
</pallas_src>

<mosaic_0001>
module attributes {stable_mosaic.version = 11 : i64} {
  func.func @_ffn_kernel_resident(%arg0: i32, %arg1: memref<16x32xf32, #tpu.memory_space<vmem>>, %arg2: memref<1x32xf32, #tpu.memory_space<vmem>>, %arg3: memref<1x32xf32, #tpu.memory_space<vmem>>, %arg4: memref<32x64xf32, #tpu.memory_space<vmem>>, %arg5: memref<1x64xf32, #tpu.memory_space<vmem>>, %arg6: memref<64x32xf32, #tpu.memory_space<vmem>>, %arg7: memref<1x32xf32, #tpu.memory_space<vmem>>, %arg8: memref<16x32xf32, #tpu.memory_space<vmem>>) attributes {dimension_semantics = [#tpu.dimension_semantics<parallel>], iteration_bounds = array<i64: 1>, scalar_prefetch = 0 : i64, scratch_operands = 0 : i64, tpu.core_type = #tpu.core_type<tc>, window_params = [{transform_indices = @transform_0, window_bounds = array<i64: 16, 32>}, {pipeline_mode = #tpu.pipeline_mode<synchronous>, transform_indices = @transform_1, window_bounds = array<i64: 1, 32>}, {pipeline_mode = #tpu.pipeline_mode<synchronous>, transform_indices = @transform_2, window_bounds = array<i64: 1, 32>}, {pipeline_mode = #tpu.pipeline_mode<synchronous>, transform_indices = @transform_3, window_bounds = array<i64: 32, 64>}, {pipeline_mode = #tpu.pipeline_mode<synchronous>, transform_indices = @transform_4, window_bounds = array<i64: 1, 64>}, {pipeline_mode = #tpu.pipeline_mode<synchronous>, transform_indices = @transform_5, window_bounds = array<i64: 64, 32>}, {pipeline_mode = #tpu.pipeline_mode<synchronous>, transform_indices = @transform_6, window_bounds = array<i64: 1, 32>}, {transform_indices = @transform_7, window_bounds = array<i64: 16, 32>}]} {
    %c0 = arith.constant 0 : index
    %c0_0 = arith.constant 0 : index
    %0 = vector.load %arg1[%c0, %c0_0] : memref<16x32xf32, #tpu.memory_space<vmem>>, vector<16x32xf32>
    %c0_1 = arith.constant 0 : index
    %c0_2 = arith.constant 0 : index
    %1 = vector.load %arg2[%c0_1, %c0_2] : memref<1x32xf32, #tpu.memory_space<vmem>>, vector<1x32xf32>
    %c0_3 = arith.constant 0 : index
    %c0_4 = arith.constant 0 : index
    %2 = vector.load %arg3[%c0_3, %c0_4] : memref<1x32xf32, #tpu.memory_space<vmem>>, vector<1x32xf32>
    %cst = arith.constant dense<0.000000e+00> : vector<16xf32>
    %3 = vector.multi_reduction <add>, %0, %cst [1] : vector<16x32xf32> to vector<16xf32>
    %4 = vector.shape_cast %3 : vector<16xf32> to vector<16x1xf32>
    %cst_5 = arith.constant 3.200000e+01 : f32
    %5 = vector.broadcast %cst_5 : f32 to vector<16x1xf32>
    %6 = arith.divf %4, %5 : vector<16x1xf32>
    %7 = vector.broadcast %6 : vector<16x1xf32> to vector<16x32xf32>
    %8 = arith.subf %0, %7 : vector<16x32xf32>
    %9 = arith.mulf %8, %8 : vector<16x32xf32>
    %cst_6 = arith.constant dense<0.000000e+00> : vector<16xf32>
    %10 = vector.multi_reduction <add>, %9, %cst_6 [1] : vector<16x32xf32> to vector<16xf32>
    %11 = vector.shape_cast %10 : vector<16xf32> to vector<16x1xf32>
    %cst_7 = arith.constant 3.200000e+01 : f32
    %12 = vector.broadcast %cst_7 : f32 to vector<16x1xf32>
    %13 = arith.divf %11, %12 : vector<16x1xf32>
    %cst_8 = arith.constant 9.99999974E-6 : f32
    %14 = vector.broadcast %cst_8 : f32 to vector<16x1xf32>
    %15 = arith.addf %13, %14 : vector<16x1xf32>
    %16 = math.rsqrt %15 : vector<16x1xf32>
    %17 = vector.broadcast %16 : vector<16x1xf32> to vector<16x32xf32>
    %18 = arith.mulf %8, %17 : vector<16x32xf32>
    %19 = vector.broadcast %1 : vector<1x32xf32> to vector<16x32xf32>
    %20 = arith.mulf %18, %19 : vector<16x32xf32>
    %21 = vector.broadcast %2 : vector<1x32xf32> to vector<16x32xf32>
    %22 = arith.addf %20, %21 : vector<16x32xf32>
    %c0_9 = arith.constant 0 : index
    %c0_10 = arith.constant 0 : index
    %23 = vector.load %arg4[%c0_9, %c0_10] : memref<32x64xf32, #tpu.memory_space<vmem>>, vector<32x64xf32>
    %cst_11 = arith.constant dense<0.000000e+00> : vector<16x64xf32>
    %24 = tpu.matmul %22, %23, %cst_11 {dimension_numbers = #tpu.dot_dimension_numbers<[1], [0], [0], [1], [0, 0, 1, 1], [], []>} : vector<16x32xf32>, vector<32x64xf32>, vector<16x64xf32> -> vector<16x64xf32>
    %c0_12 = arith.constant 0 : index
    %c0_13 = arith.constant 0 : index
    %25 = vector.load %arg5[%c0_12, %c0_13] : memref<1x64xf32, #tpu.memory_space<vmem>>, vector<1x64xf32>
    %26 = vector.broadcast %25 : vector<1x64xf32> to vector<16x64xf32>
    %27 = arith.addf %24, %26 : vector<16x64xf32>
    %cst_14 = arith.constant 5.000000e-01 : f32
    %28 = vector.broadcast %cst_14 : f32 to vector<16x64xf32>
    %29 = arith.mulf %28, %27 : vector<16x64xf32>
    %cst_15 = arith.constant 0.707106769 : f32
    %30 = vector.broadcast %cst_15 : f32 to vector<16x64xf32>
    %31 = arith.mulf %27, %30 : vector<16x64xf32>
    %32 = math.erf %31 : vector<16x64xf32>
    %cst_16 = arith.constant 1.000000e+00 : f32
    %33 = vector.broadcast %cst_16 : f32 to vector<16x64xf32>
    %34 = arith.addf %33, %32 : vector<16x64xf32>
    %35 = arith.mulf %29, %34 : vector<16x64xf32>
    %c0_17 = arith.constant 0 : index
    %c0_18 = arith.constant 0 : index
    %36 = vector.load %arg6[%c0_17, %c0_18] : memref<64x32xf32, #tpu.memory_space<vmem>>, vector<64x32xf32>
    %cst_19 = arith.constant dense<0.000000e+00> : vector<16x32xf32>
    %37 = tpu.matmul %35, %36, %cst_19 {dimension_numbers = #tpu.dot_dimension_numbers<[1], [0], [0], [1], [0, 0, 1, 1], [], []>} : vector<16x64xf32>, vector<64x32xf32>, vector<16x32xf32> -> vector<16x32xf32>
    %c0_20 = arith.constant 0 : index
    %c0_21 = arith.constant 0 : index
    %38 = vector.load %arg7[%c0_20, %c0_21] : memref<1x32xf32, #tpu.memory_space<vmem>>, vector<1x32xf32>
    %39 = vector.broadcast %38 : vector<1x32xf32> to vector<16x32xf32>
    %40 = arith.addf %37, %39 : vector<16x32xf32>
    %c0_22 = arith.constant 0 : index
    %c0_23 = arith.constant 0 : index
    %41 = vector.load %arg8[%c0_22, %c0_23] : memref<16x32xf32, #tpu.memory_space<vmem>>, vector<16x32xf32>
    tpu.vector_store %arg8[%c0_22, %c0_23], %40 {strides = array<i32>} : memref<16x32xf32, #tpu.memory_space<vmem>>, vector<16x32xf32>,
    return
  }
  func.func @transform_0(%arg0: i32) -> (i32, i32) {
    %c0_i32 = arith.constant 0 : i32
    %c0_i32_0 = arith.constant 0 : i32
    return %arg0, %c0_i32 : i32, i32
  }
  func.func @transform_1(%arg0: i32) -> (i32, i32) {
    %c0_i32 = arith.constant 0 : i32
    %c0_i32_0 = arith.constant 0 : i32
    %c0_i32_1 = arith.constant 0 : i32
    return %c0_i32, %c0_i32_0 : i32, i32
  }
  func.func @transform_2(%arg0: i32) -> (i32, i32) {
    %c0_i32 = arith.constant 0 : i32
    %c0_i32_0 = arith.constant 0 : i32
    %c0_i32_1 = arith.constant 0 : i32
    return %c0_i32, %c0_i32_0 : i32, i32
  }
  func.func @transform_3(%arg0: i32) -> (i32, i32) {
    %c0_i32 = arith.constant 0 : i32
    %c0_i32_0 = arith.constant 0 : i32
    %c0_i32_1 = arith.constant 0 : i32
    return %c0_i32, %c0_i32_0 : i32, i32
  }
  func.func @transform_4(%arg0: i32) -> (i32, i32) {
    %c0_i32 = arith.constant 0 : i32
    %c0_i32_0 = arith.constant 0 : i32
    %c0_i32_1 = arith.constant 0 : i32
    return %c0_i32, %c0_i32_0 : i32, i32
  }
  func.func @transform_5(%arg0: i32) -> (i32, i32) {
    %c0_i32 = arith.constant 0 : i32
    %c0_i32_0 = arith.constant 0 : i32
    %c0_i32_1 = arith.constant 0 : i32
    return %c0_i32, %c0_i32_0 : i32, i32
  }
  func.func @transform_6(%arg0: i32) -> (i32, i32) {
    %c0_i32 = arith.constant 0 : i32
    %c0_i32_0 = arith.constant 0 : i32
    %c0_i32_1 = arith.constant 0 : i32
    return %c0_i32, %c0_i32_0 : i32, i32
  }
  func.func @transform_7(%arg0: i32) -> (i32, i32) {
    %c0_i32 = arith.constant 0 : i32
    %c0_i32_0 = arith.constant 0 : i32
    return %arg0, %c0_i32 : i32, i32
  }
}

</mosaic_0001>

<llo_original>
// kernel: tpu_custom_call.1
$region0: #{tpu_custom_call.1}
  #allocation0 [shape = 'u32[]', space=smem, size = 0x4, offset = 0x4, fixed_abs, tag = 'smem constant byte address 0x4 - core index']
  #allocation1 [shape = 'u32[144,128]{1,0:T(1,128)}', space=vmem, size = 0x12000, scoped, tag = 'internal scratch']
  %s0 = inlined_call_operand.vmem [shape: f32[16,32], index: 0, kind: input, shape index: {}]
  %s1 = inlined_call_operand.vmem [shape: f32[1,32], index: 1, kind: input, shape index: {}]
  %s2 = inlined_call_operand.vmem [shape: f32[1,32], index: 2, kind: input, shape index: {}]
  %s3 = inlined_call_operand.vmem [shape: f32[32,64], index: 3, kind: input, shape index: {}]
  %s4 = inlined_call_operand.vmem [shape: f32[1,64], index: 4, kind: input, shape index: {}]
  %s5 = inlined_call_operand.vmem [shape: f32[64,32], index: 5, kind: input, shape index: {}]
  %s6 = inlined_call_operand.vmem [shape: f32[1,32], index: 6, kind: input, shape index: {}]
  %s7 = inlined_call_operand.hbm [shape: f32[16,32], index: 7, kind: output, shape index: {}]
  %s8 = sld [smem:[#allocation0]]
  $region38: #{tpu_custom_call.1} parent=0
    _
  %s10 = ssub.s32 1, %s8
  %s11 = scalar_select 0, %s10, %s8
  $region1: #{tpu_custom_call.1} parent=0
    #allocation2 [shape = 'u8[8192]{0}', space=vmem, size = 0x2000, scoped, tag = 'output window, operand 0, single buffered']
    #allocation3 [shape = 's32[1]{0}', space=sflag, size = 0x4, scoped, tag = 'scoped memory for tpu_custom_call.1']
    %12 = vsyncpa [#allocation3], 0
    // Predicated region
    $region2: #{tpu_custom_call.1} parent=1 // pred_check
      _
    $region3: #{tpu_custom_call.1} parent=1 // pred_check_branch
      %14 = sbr.rel (0) target = $region5
    $region4: #{tpu_custom_call.1} parent=1 // pred_region
      _
    $region5: #{tpu_custom_call.1} parent=1 // pred_fallthru
      _
    // Predicated region
    $region6: #{tpu_custom_call.1} parent=1 // pred_check
      _
    $region7: #{tpu_custom_call.1} parent=1 // pred_check_branch
      %16 = sbr.rel (0) target = $region9
    $region8: #{tpu_custom_call.1} parent=1 // pred_region
      _
    $region9: #{tpu_custom_call.1} parent=1 // pred_fallthru
      _
    // Predicated region
    $region10: #{tpu_custom_call.1} parent=1 // pred_check
      _
    $region11: #{tpu_custom_call.1} parent=1 // pred_check_branch
      %18 = sbr.rel (0) target = $region13
    $region12: #{tpu_custom_call.1} parent=1 // pred_region
      _
    $region13: #{tpu_custom_call.1} parent=1 // pred_fallthru
      _
    // Predicated region
    $region14: #{tpu_custom_call.1} parent=1 // pred_check
      _
    $region15: #{tpu_custom_call.1} parent=1 // pred_check_branch
      %20 = sbr.rel (0) target = $region17
    $region16: #{tpu_custom_call.1} parent=1 // pred_region
      _
    $region17: #{tpu_custom_call.1} parent=1 // pred_fallthru
      _
    // Predicated region
    $region18: #{tpu_custom_call.1} parent=1 // pred_check
      _
    $region19: #{tpu_custom_call.1} parent=1 // pred_check_branch
      %22 = sbr.rel (0) target = $region21
    $region20: #{tpu_custom_call.1} parent=1 // pred_region
      _
    $region21: #{tpu_custom_call.1} parent=1 // pred_fallthru
      _
    // Predicated region
    $region22: #{tpu_custom_call.1} parent=1 // pred_check
      _
    $region23: #{tpu_custom_call.1} parent=1 // pred_check_branch
      %24 = sbr.rel (0) target = $region25
    $region24: #{tpu_custom_call.1} parent=1 // pred_region
      _
    $region25: #{tpu_custom_call.1} parent=1 // pred_fallthru
      _
    // Predicated region
    $region26: #{tpu_custom_call.1} parent=1 // pred_check
      _
    $region27: #{tpu_custom_call.1} parent=1 // pred_check_branch
      %26 = sbr.rel (0) target = $region29
    $region28: #{tpu_custom_call.1} parent=1 // pred_region
      _
    $region29: #{tpu_custom_call.1} parent=1 // pred_fallthru
      _
    %v27 = vld [vmem:[%s0] sm:$0xff]
    %v28 = vld [vmem:[%s0 + $0x8] sm:$0xff]
    %v29 = vld [vmem:[%s1] sm:$0x1]
    %v30 = vld [vmem:[%s2] sm:$0x1]
    %vm31 = vcmask 261120
    %v32 = vsel %vm31, %v27, 0.0
    %33 = vadd.xlane.f32.xlu0 %v32
    %v34 = vpop.xlane.xlu0 %33
    %v35 = vsel %vm31, %v28, 0.0
    %36 = vadd.xlane.f32.xlu0 %v35
    %v37 = vpop.xlane.xlu0 %36
    %v38 = vrcp.pop 32.0
    %v39 = vmul.f32 %v34, %v38
    %v40 = vmul.f32 %v37, %v38
    %v41 = vsub.f32 %v27, %v39
    %v42 = vsub.f32 %v28, %v40
    %v43 = vmul.f32 %v41, %v41
    %v44 = vmul.f32 %v42, %v42
    %v45 = vsel %vm31, %v43, 0.0
    %46 = vadd.xlane.f32.xlu0 %v45
    %v47 = vpop.xlane.xlu0 %46
    %v48 = vsel %vm31, %v44, 0.0
    %49 = vadd.xlane.f32.xlu0 %v48
    %v50 = vpop.xlane.xlu0 %49
    %v51 = vmul.f32 %v47, %v38
    %v52 = vmul.f32 %v50, %v38
    %v53 = vadd.f32 %v51, 1e-05
    %v54 = vadd.f32 %v52, 1e-05
    %v55 = vrsqrt.pop %v53
    %v56 = vrsqrt.pop %v54
    %v57 = vmul.f32 %v41, %v55
    %v58 = vmul.f32 %v42, %v56
    %v60 = vlaneseq
    %v61 = vshrl.u32 %v60, 7
    %v62 = vsub.s32 0, %v61
    %v63 = vrot.slane %v29, %v62
    %v65 = vmul.f32 %v57, %v63
    %v66 = vmul.f32 %v58, %v63
    %v68 = vlaneseq
    %v69 = vshrl.u32 %v68, 7
    %v70 = vsub.s32 0, %v69
    %v71 = vrot.slane %v30, %v70
    %v73 = vadd.f32 %v65, %v71
    %v74 = vadd.f32 %v66, %v71
    %v75 = vld [vmem:[%s3] sm:$0xff]
    %v76 = vld [vmem:[%s3 + $0x8] sm:$0xff]
    %v77 = vld [vmem:[%s3 + $0x10] sm:$0xff]
    %v78 = vld [vmem:[%s3 + $0x18] sm:$0xff]
    %v79 = vld [vmem:[%s4] sm:$0x1]
    %v81 = vlaneseq
    %v82 = vshrl.u32 %v81, 7
    %v83 = vsub.s32 0, %v82
    %v84 = vrot.slane %v79, %v83
    %v87 = vsel %vm31, %v73, 0
    %v90 = vsel %vm31, %v74, 0
    %92 = vmatprep.subr.mxu0 0.0
    %93 = vmatpush1.msra.mxu0 %v75
    %94 = vmatprep.subr.mxu0 0.0
    %95 = vmatpush1.msra.mxu0 %v76
    %96 = vmatprep.subr.mxu0 0.0
    %97 = vmatpush1.msra.mxu0 %v77
    %98 = vmatprep.subr.mxu0 0.0
    %99 = vmatpush1.msra.mxu0 %v78
    %100 = vmatprep.subr.mxu0 0.0
    %101 = vmatpush1.msra.mxu0 0.0
    %102 = vmatprep.subr.mxu0 0.0
    %103 = vmatpush1.msra.mxu0 0.0
    %104 = vmatprep.subr.mxu0 0.0
    %105 = vmatpush1.msra.mxu0 0.0
    %106 = vmatprep.subr.mxu0 0.0
    %107 = vmatpush1.msra.mxu0 0.0
    %108 = vmatprep.subr.mxu0 0.0
    %109 = vmatpush1.msra.mxu0 0.0
    %110 = vmatprep.subr.mxu0 0.0
    %111 = vmatpush1.msra.mxu0 0.0
    %112 = vmatprep.subr.mxu0 0.0
    %113 = vmatpush1.msra.mxu0 0.0
    %114 = vmatprep.subr.mxu0 0.0
    %115 = vmatpush1.msra.mxu0 0.0
    %116 = vmatprep.subr.mxu0 0.0
    %117 = vmatpush1.msra.mxu0 0.0
    %118 = vmatprep.subr.mxu0 0.0
    %119 = vmatpush1.msra.mxu0 0.0
    %120 = vmatprep.subr.mxu0 0.0
    %121 = vmatpush1.msra.mxu0 0.0
    %122 = vmatprep.subr.mxu0 0.0
    %123 = vmatpush1.msra.mxu0 0.0
    %124 = vmatprep.subr.mxu0 0.0
    %125 = vmatpush1.msra.mxu0 0.0
    %126 = vmatprep.subr.mxu0 0.0
    %127 = vmatpush1.msra.mxu0 0.0
    %128 = vmatprep.subr.mxu0 0.0
    %129 = vmatpush1.msra.mxu0 0.0
    %130 = vmatprep.subr.mxu0 0.0
    %131 = vmatpush1.msra.mxu0 0.0
    %132 = vmatprep.subr.mxu0 0.0
    %133 = vmatpush1.msra.mxu0 0.0
    %134 = vmatprep.subr.mxu0 0.0
    %135 = vmatpush1.msra.mxu0 0.0
    %136 = vmatprep.subr.mxu0 0.0
    %137 = vmatpush1.msra.mxu0 0.0
    %138 = vmatprep.subr.mxu0 0.0
    %139 = vmatpush1.msra.mxu0 0.0
    %140 = vmatprep.subr.mxu0 0.0
    %141 = vmatpush1.msra.mxu0 0.0
    %142 = vmatprep.subr.mxu0 0.0
    %143 = vmatpush1.msra.mxu0 0.0
    %144 = vmatprep.subr.mxu0 0.0
    %145 = vmatpush1.msra.mxu0 0.0
    %146 = vmatprep.subr.mxu0 0.0
    %147 = vmatpush1.msra.mxu0 0.0
    %148 = vmatprep.subr.mxu0 0.0
    %149 = vmatpush1.msra.mxu0 0.0
    %150 = vmatprep.subr.mxu0 0.0
    %151 = vmatpush1.msra.mxu0 0.0
    %152 = vmatprep.subr.mxu0 0.0
    %153 = vmatpush1.msra.mxu0 0.0
    %154 = vmatprep.subr.mxu0 0.0
    %155 = vmatpush1.msra.mxu0 0.0
    %156 = vmatprep.mubr.f32.mxu0 0.0
    %157 = vmatmul.mubr.f32.gmra.mrb[0].mxu0 %v87
    %v158 = vpop.f32.mrb[0].mxu0
    %v159 = vadd.f32 %v84, %v158
    %v160 = vpop.f32.mrb[0].mxu0
    %161 = vmatprep.mubr.f32.mxu0 0.0
    %162 = vmatmul.mubr.f32.gmra.mrb[0].mxu0 %v90
    %v163 = vpop.f32.mrb[0].mxu0
    %v164 = vadd.f32 %v84, %v163
    %v165 = vpop.f32.mrb[0].mxu0
    %166 = vdwg.mxu0
    %v167 = vmul.f32 %v159, 0.5
    %v168 = vmul.f32 %v164, 0.5
    %v169 = vmul.f32 %v159, 0.70710677
    %v170 = vmul.f32 %v164, 0.70710677
    %v171 = verf.f32.pop %v169
    %v172 = verf.f32.pop %v170
    %v173 = vadd.f32 %v171, 1.0
    %v174 = vadd.f32 %v172, 1.0
    %v175 = vmul.f32 %v167, %v173
    %v176 = vmul.f32 %v168, %v174
    %v177 = vld [vmem:[%s5] sm:$0xff]
    %v178 = vld [vmem:[%s5 + $0x8] sm:$0xff]
    %v179 = vld [vmem:[%s5 + $0x10] sm:$0xff]
    %v180 = vld [vmem:[%s5 + $0x18] sm:$0xff]
    %v181 = vld [vmem:[%s5 + $0x20] sm:$0xff]
    %v182 = vld [vmem:[%s5 + $0x28] sm:$0xff]
    %v183 = vld [vmem:[%s5 + $0x30] sm:$0xff]
    %v184 = vld [vmem:[%s5 + $0x38] sm:$0xff]
    %v185 = vld [vmem:[%s6] sm:$0x1]
    %v187 = vlaneseq
    %v188 = vshrl.u32 %v187, 7
    %v189 = vsub.s32 0, %v188
    %v190 = vrot.slane %v185, %v189
    %vm192 = vcmask 523264
    %v194 = vsel %vm192, %v175, 0
    %v197 = vsel %vm192, %v176, 0
    %199 = vmatprep.subr.mxu0 0.0
    %200 = vmatpush1.msra.mxu0 %v177
    %201 = vmatprep.subr.mxu0 0.0
    %202 = vmatpush1.msra.mxu0 %v178
    %203 = vmatprep.subr.mxu0 0.0
    %204 = vmatpush1.msra.mxu0 %v179
    %205 = vmatprep.subr.mxu0 0.0
    %206 = vmatpush1.msra.mxu0 %v180
    %207 = vmatprep.subr.mxu0 0.0
    %208 = vmatpush1.msra.mxu0 %v181
    %209 = vmatprep.subr.mxu0 0.0
    %210 = vmatpush1.msra.mxu0 %v182
    %211 = vmatprep.subr.mxu0 0.0
    %212 = vmatpush1.msra.mxu0 %v183
    %213 = vmatprep.subr.mxu0 0.0
    %214 = vmatpush1.msra.mxu0 %v184
    %215 = vmatprep.subr.mxu0 0.0
    %216 = vmatpush1.msra.mxu0 0.0
    %217 = vmatprep.subr.mxu0 0.0
    %218 = vmatpush1.msra.mxu0 0.0
    %219 = vmatprep.subr.mxu0 0.0
    %220 = vmatpush1.msra.mxu0 0.0
    %221 = vmatprep.subr.mxu0 0.0
    %222 = vmatpush1.msra.mxu0 0.0
    %223 = vmatprep.subr.mxu0 0.0
    %224 = vmatpush1.msra.mxu0 0.0
    %225 = vmatprep.subr.mxu0 0.0
    %226 = vmatpush1.msra.mxu0 0.0
    %227 = vmatprep.subr.mxu0 0.0
    %228 = vmatpush1.msra.mxu0 0.0
    %229 = vmatprep.subr.mxu0 0.0
    %230 = vmatpush1.msra.mxu0 0.0
    %231 = vmatprep.subr.mxu0 0.0
    %232 = vmatpush1.msra.mxu0 0.0
    %233 = vmatprep.subr.mxu0 0.0
    %234 = vmatpush1.msra.mxu0 0.0
    %235 = vmatprep.subr.mxu0 0.0
    %236 = vmatpush1.msra.mxu0 0.0
    %237 = vmatprep.subr.mxu0 0.0
    %238 = vmatpush1.msra.mxu0 0.0
    %239 = vmatprep.subr.mxu0 0.0
    %240 = vmatpush1.msra.mxu0 0.0
    %241 = vmatprep.subr.mxu0 0.0
    %242 = vmatpush1.msra.mxu0 0.0
    %243 = vmatprep.subr.mxu0 0.0
    %244 = vmatpush1.msra.mxu0 0.0
    %245 = vmatprep.subr.mxu0 0.0
    %246 = vmatpush1.msra.mxu0 0.0
    %247 = vmatprep.subr.mxu0 0.0
    %248 = vmatpush1.msra.mxu0 0.0
    %249 = vmatprep.subr.mxu0 0.0
    %250 = vmatpush1.msra.mxu0 0.0
    %251 = vmatprep.subr.mxu0 0.0
    %252 = vmatpush1.msra.mxu0 0.0
    %253 = vmatprep.subr.mxu0 0.0
    %254 = vmatpush1.msra.mxu0 0.0
    %255 = vmatprep.subr.mxu0 0.0
    %256 = vmatpush1.msra.mxu0 0.0
    %257 = vmatprep.subr.mxu0 0.0
    %258 = vmatpush1.msra.mxu0 0.0
    %259 = vmatprep.subr.mxu0 0.0
    %260 = vmatpush1.msra.mxu0 0.0
    %261 = vmatprep.subr.mxu0 0.0
    %262 = vmatpush1.msra.mxu0 0.0
    %263 = vmatprep.mubr.f32.mxu0 0.0
    %264 = vmatmul.mubr.f32.gmra.mrb[0].mxu0 %v194
    %v265 = vpop.f32.mrb[0].mxu0
    %v266 = vadd.f32 %v190, %v265
    %v267 = vpop.f32.mrb[0].mxu0
    %268 = vmatprep.mubr.f32.mxu0 0.0
    %269 = vmatmul.mubr.f32.gmra.mrb[0].mxu0 %v197
    %v270 = vpop.f32.mrb[0].mxu0
    %v271 = vadd.f32 %v190, %v270
    %v272 = vpop.f32.mrb[0].mxu0
    %273 = vdwg.mxu0
    %274 = vst.msk [vmem:[#allocation2] sm:$0xff] %vm31, %v266
    %275 = vst.msk [vmem:[#allocation2 + $0x8] sm:$0xff] %vm31, %v271
    // Predicated region
    $region30: #{tpu_custom_call.1} parent=1 // pred_check
      _
    $region31: #{tpu_custom_call.1} parent=1 // pred_check_branch
      %277 = sbr.rel (0) target = $region33
    $region32: #{tpu_custom_call.1} parent=1 // pred_region
      %s279 = ssub.s32 256, 256
      %280 = vsyncadd [#allocation3], %s279
      %s281 = sshll.u32 [#allocation2], 4
      %s282 = int_to_ptr.vmem [resolvable:$true] %s281
      %287 = dma.vmem_to_hbm [thread:$0]  %s282, 256, %s7, [#allocation3], 128, 128, 8
    $region33: #{tpu_custom_call.1} parent=1 // pred_fallthru
      _
    // Predicated region
    $region34: #{tpu_custom_call.1} parent=1 // pred_check
      _
    $region35: #{tpu_custom_call.1} parent=1 // pred_check_branch
      %289 = sbr.rel (0) target = $region37
    $region36: #{tpu_custom_call.1} parent=1 // pred_region
      %290 = dma.done [#allocation3], 256
    $region37: #{tpu_custom_call.1} parent=1 // pred_fallthru
      _
    %291 = vsyncpa [#allocation3], 1

</llo_original>
